<compile_context>
chip_gen: v6e
topology: v6e:2x2x1
jax: 0.10.0
libtpu: 0.0.40
codegen_flags: <defaults>
</compile_context>

<pallas_src>
import functools

import jax
import jax.numpy as jnp
import numpy as np
from jax import lax
from jax.experimental import pallas as pl
from jax.experimental.pallas import tpu as pltpu


# ----------------------------- Pallas kernel ---------------------------------
def _conv_bn_kernel(x_ref, w_ref, shift_ref, out_ref, *,
                    KH, KW, dil, pad, W, P, Mrow, pad_lead, NB):
    """Fused stride-1 direct conv + BN epilogue for one batch block.

    x_ref    : (NB, C, Lx)     H-padded input, row pitch P, lane layout is
                               [pad_lead | (H+2*pad)*P | pad_trail]
    w_ref    : (KH*KW, OC, C)  conv weights with BN scale folded in
    shift_ref: (OC, 1)         BN shift (f32)
    out_ref  : (NB, OC, Mrow)  Mrow = OH*P, output row pitch P
    """
    C = x_ref.shape[1]

    # Width (W-direction) zero-padding is handled in-kernel with lane masks;
    # only the H direction is pre-padded in the wrapper buffer.  The mask only
    # depends on the kernel column j.  Masks that are trivially all-true are
    # skipped entirely.
    need_mask = [not (pad - j * dil <= 0 and W + pad - j * dil >= P)
                 for j in range(KW)]
    col = None
    if any(need_mask):
        col = lax.broadcasted_iota(jnp.int32, (C, Mrow), 1) % P
    masks = []
    for j in range(KW):
        if need_mask[j]:
            lo = pad - j * dil                      # valid iff lo <= col < W+lo
            masks.append((col >= lo) & (col < W + lo))
        else:
            masks.append(None)

    for b in range(NB):                             # static unroll
        acc = None
        for i in range(KH):                         # static unroll over taps
            for j in range(KW):
                start = pad_lead + i * dil * P + j * dil - pad
                slab = x_ref[b, :, start:start + Mrow]          # (C, Mrow)
                if masks[j] is not None:
                    slab = jnp.where(masks[j], slab,
                                     jnp.zeros((), slab.dtype))
                tap = jnp.dot(w_ref[i * KW + j], slab,
                              preferred_element_type=jnp.float32)
                acc = tap if acc is None else acc + tap
        # BN epilogue (f32) + single lane-dense store.
        out_ref[b] = (acc + shift_ref[...]).astype(out_ref.dtype)


# ------------------------------ wrapper ---------------------------------------
def basic_conv2d(x, weight, gamma, beta, running_mean, running_var, *,
                 stride=1, padding=0, dilation=1, eps=1e-5,
                 compute_dtype=jnp.float32, batch_block=1):
    """Forward of BasicConv2d: BN(conv2d(x, weight)), eval-mode BN.
    x: (N, C, H, W), weight: (OC, C, KH, KW).  Output f32 NCHW."""
    N, C, H, W = x.shape
    OC, C2, KH, KW = weight.shape
    assert C2 == C
    p, d, s = int(padding), int(dilation), int(stride)

    # Stride-1 geometry; stride > 1 is handled exactly by subsampling the
    # stride-1 output below.
    OH1 = H + 2 * p - d * (KH - 1)
    OW1 = W + 2 * p - d * (KW - 1)
    assert OH1 >= 1 and OW1 >= 1, "kernel window does not fit the input"

    P = max(W, OW1)                          # common row pitch (input & output)
    pad_lead = p
    pad_trail = max(0, (KW - 1) * d - p)
    Mrow = OH1 * P                           # output lane width per batch
    Lx = pad_lead + (H + 2 * p) * P + pad_trail

    NB = int(batch_block)
    assert N % NB == 0, "batch_block must divide the batch size"

    # ---- build operands (single small pass over x, cast fused in) ------------
    xb = jnp.pad(x.astype(compute_dtype),
                 ((0, 0), (0, 0), (p, p), (0, P - W)))      # (N, C, H+2p, P)
    xb = xb.reshape(N, C, (H + 2 * p) * P)
    xb = jnp.pad(xb, ((0, 0), (0, 0), (pad_lead, pad_trail)))   # (N, C, Lx)

    scale = gamma / jnp.sqrt(running_var + eps)                  # (OC,)
    shift = (beta - running_mean * scale).astype(jnp.float32).reshape(OC, 1)
    w_s = (weight * scale[:, None, None, None]).transpose(2, 3, 0, 1)
    w_s = w_s.reshape(KH * KW, OC, C).astype(compute_dtype)      # fold BN scale

    # ---- VMEM sanity: must fit v5e's 16 MiB scoped / v7x's 64 MiB physical ---
    def _pad8_128(a, b):
        return (-(-a // 8) * 8) * (-(-b // 128) * 128)
    itm = jnp.dtype(compute_dtype).itemsize
    est = 2 * (NB * _pad8_128(C, Lx) * itm + NB * _pad8_128(OC, Mrow) * 4)
    est += KH * KW * _pad8_128(OC, C) * itm + _pad8_128(OC, 1) * 4
    assert est < 12 * 1024 * 1024, (
        "per-step VMEM too large; TODO(synk): add an OH-tiling grid axis")

    kern = functools.partial(_conv_bn_kernel, KH=KH, KW=KW, dil=d, pad=p,
                             W=W, P=P, Mrow=Mrow, pad_lead=pad_lead, NB=NB)

    out_buf = pl.pallas_call(
        kern,
        out_shape=jax.ShapeDtypeStruct((N, OC, Mrow), jnp.float32),
        grid_spec=pltpu.PrefetchScalarGridSpec(
            num_scalar_prefetch=0,
            grid=(N // NB,),
            in_specs=[
                pl.BlockSpec((NB, C, Lx), lambda n: (n, 0, 0)),        # x
                pl.BlockSpec((KH * KW, OC, C), lambda n: (0, 0, 0)),   # weights
                pl.BlockSpec((OC, 1), lambda n: (0, 0)),               # BN shift
            ],
            out_specs=pl.BlockSpec((NB, OC, Mrow), lambda n: (n, 0, 0)),
        ),
        compiler_params=pltpu.CompilerParams(
            dimension_semantics=("parallel",)),
    )(xb, w_s, shift)

    out = out_buf.reshape(N, OC, OH1, P)     # pure reshape when P == OW1
    if P != OW1:
        out = out[:, :, :, :OW1]             # crop pitch-only junk columns
    if s > 1:
        out = out[:, :, ::s, ::s]            # exact strided-conv subsample
    return out


# --------------------------------- main ---------------------------------------
if __name__ == "__main__":
    # Module config: in_planes=4, out_planes=8, kernel=3, stride=1, padding=1
    in_planes, out_planes = 4, 8
    N, H, W = 2, 16, 16

    key = jax.random.PRNGKey(0)
    kx, kw, kg, kb, km, kv = jax.random.split(key, 6)

    x = jax.random.normal(kx, (N, in_planes, H, W), dtype=jnp.float32)
    weight = jax.random.normal(kw, (out_planes, in_planes, 3, 3),
                               dtype=jnp.float32) * 0.1
    gamma = 1.0 + 0.1 * jax.random.normal(kg, (out_planes,), dtype=jnp.float32)
    beta = 0.1 * jax.random.normal(kb, (out_planes,), dtype=jnp.float32)
    running_mean = 0.1 * jax.random.normal(km, (out_planes,), dtype=jnp.float32)
    running_var = jnp.abs(jax.random.normal(kv, (out_planes,),
                                            dtype=jnp.float32)) + 0.5

    def reference(x, weight, stride, padding, dilation):
        conv = lax.conv_general_dilated(
            x, weight, window_strides=(stride, stride),
            padding=[(padding, padding), (padding, padding)],
            rhs_dilation=(dilation, dilation),
            dimension_numbers=("NCHW", "OIHW", "NCHW"))
        inv = 1.0 / jnp.sqrt(running_var + 1e-5)
        return ((conv - running_mean[None, :, None, None])
                * (gamma * inv)[None, :, None, None]
                + beta[None, :, None, None])

    # 1) module config, f32 path (tight tolerance).
    fwd = jax.jit(functools.partial(basic_conv2d,
                                    stride=1, padding=1, dilation=1))
    out = jax.block_until_ready(fwd(x, weight, gamma, beta,
                                    running_mean, running_var))
    ref = reference(x, weight, 1, 1, 1)
    np.testing.assert_allclose(np.asarray(out), np.asarray(ref),
                               rtol=1e-4, atol=1e-4)

    # 2) bf16 operands (v6e/v7x MXU rate), f32 accumulation; looser tolerance.
    fwd_bf16 = jax.jit(functools.partial(basic_conv2d, stride=1, padding=1,
                                         dilation=1,
                                         compute_dtype=jnp.bfloat16))
    out_bf16 = jax.block_until_ready(fwd_bf16(x, weight, gamma, beta,
                                              running_mean, running_var))
    np.testing.assert_allclose(np.asarray(out_bf16), np.asarray(ref),
                               rtol=5e-2, atol=5e-2)

    # 3) generality: valid padding + stride 2 (exercises the width-mask edge
    #    and the strided-output subsample) collapsed to one grid step
    #    (batch_block=N, the single-TC v5e/v6e setting).
    fwd_s2 = jax.jit(functools.partial(basic_conv2d, stride=2, padding=0,
                                       dilation=1, batch_block=N))
    out_s2 = jax.block_until_ready(fwd_s2(x, weight, gamma, beta,
                                          running_mean, running_var))
    ref_s2 = reference(x, weight, 2, 0, 1)
    np.testing.assert_allclose(np.asarray(out_s2), np.asarray(ref_s2),
                               rtol=1e-4, atol=1e-4)

    print("KERNEL_OK")
</pallas_src>

<mosaic_0001>
module attributes {stable_mosaic.version = 11 : i64} {
  func.func @_conv_bn_kernel(%arg0: i32, %arg1: memref<1x4x290xf32, #tpu.memory_space<vmem>>, %arg2: memref<9x8x4xf32, #tpu.memory_space<vmem>>, %arg3: memref<8x1xf32, #tpu.memory_space<vmem>>, %arg4: memref<1x8x256xf32, #tpu.memory_space<vmem>>) attributes {dimension_semantics = [#tpu.dimension_semantics<parallel>], iteration_bounds = array<i64: 2>, scalar_prefetch = 0 : i64, scratch_operands = 0 : i64, tpu.core_type = #tpu.core_type<tc>, window_params = [{transform_indices = @transform_0, window_bounds = array<i64: 1, 4, 290>}, {pipeline_mode = #tpu.pipeline_mode<synchronous>, transform_indices = @transform_1, window_bounds = array<i64: 9, 8, 4>}, {pipeline_mode = #tpu.pipeline_mode<synchronous>, transform_indices = @transform_2, window_bounds = array<i64: 8, 1>}, {transform_indices = @transform_3, window_bounds = array<i64: 1, 8, 256>}]} {
    %0 = tpu.iota {dimensions = array<i32: 1>} : vector<4x256xi32>
    %c16_i32 = arith.constant 16 : i32
    %c0_i32 = arith.constant 0 : i32
    %1 = arith.cmpi eq, %c16_i32, %c0_i32 : i32
    %c1_i32 = arith.constant 1 : i32
    %2 = arith.select %1, %c1_i32, %c16_i32 : i32
    %3 = vector.broadcast %2 : i32 to vector<4x256xi32>
    %4 = arith.remsi %0, %3 : vector<4x256xi32>
    %c0_i32_0 = arith.constant 0 : i32
    %5 = vector.broadcast %c0_i32_0 : i32 to vector<4x256xi32>
    %6 = arith.cmpi ne, %4, %5 : vector<4x256xi32>
    %c0_i32_1 = arith.constant 0 : i32
    %7 = vector.broadcast %c0_i32_1 : i32 to vector<4x256xi32>
    %8 = arith.cmpi slt, %4, %7 : vector<4x256xi32>
    %c0_i32_2 = arith.constant 0 : i32
    %9 = arith.cmpi slt, %2, %c0_i32_2 : i32
    %10 = vector.broadcast %9 : i1 to vector<4x256xi1>
    %11 = vector.broadcast %10 : vector<4x256xi1> to vector<4x256xi1>
    %12 = arith.xori %8, %11 : vector<4x256xi1>
    %13 = arith.andi %12, %6 : vector<4x256xi1>
    %14 = vector.broadcast %2 : i32 to vector<4x256xi32>
    %15 = arith.addi %4, %14 : vector<4x256xi32>
    %16 = arith.select %13, %15, %4 : vector<4x256xi1>, vector<4x256xi32>
    %c1_i32_3 = arith.constant 1 : i32
    %17 = vector.broadcast %c1_i32_3 : i32 to vector<4x256xi32>
    %18 = arith.cmpi sge, %16, %17 : vector<4x256xi32>
    %c17_i32 = arith.constant 17 : i32
    %19 = vector.broadcast %c17_i32 : i32 to vector<4x256xi32>
    %20 = arith.cmpi slt, %16, %19 : vector<4x256xi32>
    %21 = arith.andi %18, %20 : vector<4x256xi1>
    %c-1_i32 = arith.constant -1 : i32
    %22 = vector.broadcast %c-1_i32 : i32 to vector<4x256xi32>
    %23 = arith.cmpi sge, %16, %22 : vector<4x256xi32>
    %c15_i32 = arith.constant 15 : i32
    %24 = vector.broadcast %c15_i32 : i32 to vector<4x256xi32>
    %25 = arith.cmpi slt, %16, %24 : vector<4x256xi32>
    %26 = arith.andi %23, %25 : vector<4x256xi1>
    %c0 = arith.constant 0 : index
    %c0_4 = arith.constant 0 : index
    %c0_5 = arith.constant 0 : index
    %27 = vector.load %arg1[%c0, %c0_4, %c0_5] : memref<1x4x290xf32, #tpu.memory_space<vmem>>, vector<1x4x256xf32>
    %28 = vector.shape_cast %27 : vector<1x4x256xf32> to vector<4x256xf32>
    %cst = arith.constant 0.000000e+00 : f32
    %29 = vector.broadcast %cst : f32 to vector<4x256xf32>
    %30 = arith.select %21, %28, %29 : vector<4x256xi1>, vector<4x256xf32>
    %c0_6 = arith.constant 0 : index
    %c0_7 = arith.constant 0 : index
    %c0_8 = arith.constant 0 : index
    %31 = vector.load %arg2[%c0_6, %c0_7, %c0_8] : memref<9x8x4xf32, #tpu.memory_space<vmem>>, vector<1x8x4xf32>
    %32 = vector.shape_cast %31 : vector<1x8x4xf32> to vector<8x4xf32>
    %cst_9 = arith.constant dense<0.000000e+00> : vector<8x256xf32>
    %33 = tpu.matmul %32, %30, %cst_9 {dimension_numbers = #tpu.dot_dimension_numbers<[1], [0], [0], [1], [0, 0, 1, 1], [], []>} : vector<8x4xf32>, vector<4x256xf32>, vector<8x256xf32> -> vector<8x256xf32>
    %c0_10 = arith.constant 0 : index
    %c0_11 = arith.constant 0 : index
    %c1 = arith.constant 1 : index
    %34 = vector.load %arg1[%c0_10, %c0_11, %c1] : memref<1x4x290xf32, #tpu.memory_space<vmem>>, vector<1x4x256xf32>
    %35 = vector.shape_cast %34 : vector<1x4x256xf32> to vector<4x256xf32>
    %c1_12 = arith.constant 1 : index
    %c0_13 = arith.constant 0 : index
    %c0_14 = arith.constant 0 : index
    %36 = vector.load %arg2[%c1_12, %c0_13, %c0_14] : memref<9x8x4xf32, #tpu.memory_space<vmem>>, vector<1x8x4xf32>
    %37 = vector.shape_cast %36 : vector<1x8x4xf32> to vector<8x4xf32>
    %cst_15 = arith.constant dense<0.000000e+00> : vector<8x256xf32>
    %38 = tpu.matmul %37, %35, %cst_15 {dimension_numbers = #tpu.dot_dimension_numbers<[1], [0], [0], [1], [0, 0, 1, 1], [], []>} : vector<8x4xf32>, vector<4x256xf32>, vector<8x256xf32> -> vector<8x256xf32>
    %39 = arith.addf %33, %38 : vector<8x256xf32>
    %c0_16 = arith.constant 0 : index
    %c0_17 = arith.constant 0 : index
    %c2 = arith.constant 2 : index
    %40 = vector.load %arg1[%c0_16, %c0_17, %c2] : memref<1x4x290xf32, #tpu.memory_space<vmem>>, vector<1x4x256xf32>
    %41 = vector.shape_cast %40 : vector<1x4x256xf32> to vector<4x256xf32>
    %cst_18 = arith.constant 0.000000e+00 : f32
    %42 = vector.broadcast %cst_18 : f32 to vector<4x256xf32>
    %43 = arith.select %26, %41, %42 : vector<4x256xi1>, vector<4x256xf32>
    %c2_19 = arith.constant 2 : index
    %c0_20 = arith.constant 0 : index
    %c0_21 = arith.constant 0 : index
    %44 = vector.load %arg2[%c2_19, %c0_20, %c0_21] : memref<9x8x4xf32, #tpu.memory_space<vmem>>, vector<1x8x4xf32>
    %45 = vector.shape_cast %44 : vector<1x8x4xf32> to vector<8x4xf32>
    %cst_22 = arith.constant dense<0.000000e+00> : vector<8x256xf32>
    %46 = tpu.matmul %45, %43, %cst_22 {dimension_numbers = #tpu.dot_dimension_numbers<[1], [0], [0], [1], [0, 0, 1, 1], [], []>} : vector<8x4xf32>, vector<4x256xf32>, vector<8x256xf32> -> vector<8x256xf32>
    %47 = arith.addf %39, %46 : vector<8x256xf32>
    %c0_23 = arith.constant 0 : index
    %c0_24 = arith.constant 0 : index
    %c16 = arith.constant 16 : index
    %48 = vector.load %arg1[%c0_23, %c0_24, %c16] : memref<1x4x290xf32, #tpu.memory_space<vmem>>, vector<1x4x256xf32>
    %49 = vector.shape_cast %48 : vector<1x4x256xf32> to vector<4x256xf32>
    %cst_25 = arith.constant 0.000000e+00 : f32
    %50 = vector.broadcast %cst_25 : f32 to vector<4x256xf32>
    %51 = arith.select %21, %49, %50 : vector<4x256xi1>, vector<4x256xf32>
    %c3 = arith.constant 3 : index
    %c0_26 = arith.constant 0 : index
    %c0_27 = arith.constant 0 : index
    %52 = vector.load %arg2[%c3, %c0_26, %c0_27] : memref<9x8x4xf32, #tpu.memory_space<vmem>>, vector<1x8x4xf32>
    %53 = vector.shape_cast %52 : vector<1x8x4xf32> to vector<8x4xf32>
    %cst_28 = arith.constant dense<0.000000e+00> : vector<8x256xf32>
    %54 = tpu.matmul %53, %51, %cst_28 {dimension_numbers = #tpu.dot_dimension_numbers<[1], [0], [0], [1], [0, 0, 1, 1], [], []>} : vector<8x4xf32>, vector<4x256xf32>, vector<8x256xf32> -> vector<8x256xf32>
    %55 = arith.addf %47, %54 : vector<8x256xf32>
    %c0_29 = arith.constant 0 : index
    %c0_30 = arith.constant 0 : index
    %c17 = arith.constant 17 : index
    %56 = vector.load %arg1[%c0_29, %c0_30, %c17] : memref<1x4x290xf32, #tpu.memory_space<vmem>>, vector<1x4x256xf32>
    %57 = vector.shape_cast %56 : vector<1x4x256xf32> to vector<4x256xf32>
    %c4 = arith.constant 4 : index
    %c0_31 = arith.constant 0 : index
    %c0_32 = arith.constant 0 : index
    %58 = vector.load %arg2[%c4, %c0_31, %c0_32] : memref<9x8x4xf32, #tpu.memory_space<vmem>>, vector<1x8x4xf32>
    %59 = vector.shape_cast %58 : vector<1x8x4xf32> to vector<8x4xf32>
    %cst_33 = arith.constant dense<0.000000e+00> : vector<8x256xf32>
    %60 = tpu.matmul %59, %57, %cst_33 {dimension_numbers = #tpu.dot_dimension_numbers<[1], [0], [0], [1], [0, 0, 1, 1], [], []>} : vector<8x4xf32>, vector<4x256xf32>, vector<8x256xf32> -> vector<8x256xf32>
    %61 = arith.addf %55, %60 : vector<8x256xf32>
    %c0_34 = arith.constant 0 : index
    %c0_35 = arith.constant 0 : index
    %c18 = arith.constant 18 : index
    %62 = vector.load %arg1[%c0_34, %c0_35, %c18] : memref<1x4x290xf32, #tpu.memory_space<vmem>>, vector<1x4x256xf32>
    %63 = vector.shape_cast %62 : vector<1x4x256xf32> to vector<4x256xf32>
    %cst_36 = arith.constant 0.000000e+00 : f32
    %64 = vector.broadcast %cst_36 : f32 to vector<4x256xf32>
    %65 = arith.select %26, %63, %64 : vector<4x256xi1>, vector<4x256xf32>
    %c5 = arith.constant 5 : index
    %c0_37 = arith.constant 0 : index
    %c0_38 = arith.constant 0 : index
    %66 = vector.load %arg2[%c5, %c0_37, %c0_38] : memref<9x8x4xf32, #tpu.memory_space<vmem>>, vector<1x8x4xf32>
    %67 = vector.shape_cast %66 : vector<1x8x4xf32> to vector<8x4xf32>
    %cst_39 = arith.constant dense<0.000000e+00> : vector<8x256xf32>
    %68 = tpu.matmul %67, %65, %cst_39 {dimension_numbers = #tpu.dot_dimension_numbers<[1], [0], [0], [1], [0, 0, 1, 1], [], []>} : vector<8x4xf32>, vector<4x256xf32>, vector<8x256xf32> -> vector<8x256xf32>
    %69 = arith.addf %61, %68 : vector<8x256xf32>
    %c0_40 = arith.constant 0 : index
    %c0_41 = arith.constant 0 : index
    %c32 = arith.constant 32 : index
    %70 = vector.load %arg1[%c0_40, %c0_41, %c32] : memref<1x4x290xf32, #tpu.memory_space<vmem>>, vector<1x4x256xf32>
    %71 = vector.shape_cast %70 : vector<1x4x256xf32> to vector<4x256xf32>
    %cst_42 = arith.constant 0.000000e+00 : f32
    %72 = vector.broadcast %cst_42 : f32 to vector<4x256xf32>
    %73 = arith.select %21, %71, %72 : vector<4x256xi1>, vector<4x256xf32>
    %c6 = arith.constant 6 : index
    %c0_43 = arith.constant 0 : index
    %c0_44 = arith.constant 0 : index
    %74 = vector.load %arg2[%c6, %c0_43, %c0_44] : memref<9x8x4xf32, #tpu.memory_space<vmem>>, vector<1x8x4xf32>
    %75 = vector.shape_cast %74 : vector<1x8x4xf32> to vector<8x4xf32>
    %cst_45 = arith.constant dense<0.000000e+00> : vector<8x256xf32>
    %76 = tpu.matmul %75, %73, %cst_45 {dimension_numbers = #tpu.dot_dimension_numbers<[1], [0], [0], [1], [0, 0, 1, 1], [], []>} : vector<8x4xf32>, vector<4x256xf32>, vector<8x256xf32> -> vector<8x256xf32>
    %77 = arith.addf %69, %76 : vector<8x256xf32>
    %c0_46 = arith.constant 0 : index
    %c0_47 = arith.constant 0 : index
    %c33 = arith.constant 33 : index
    %78 = vector.load %arg1[%c0_46, %c0_47, %c33] : memref<1x4x290xf32, #tpu.memory_space<vmem>>, vector<1x4x256xf32>
    %79 = vector.shape_cast %78 : vector<1x4x256xf32> to vector<4x256xf32>
    %c7 = arith.constant 7 : index
    %c0_48 = arith.constant 0 : index
    %c0_49 = arith.constant 0 : index
    %80 = vector.load %arg2[%c7, %c0_48, %c0_49] : memref<9x8x4xf32, #tpu.memory_space<vmem>>, vector<1x8x4xf32>
    %81 = vector.shape_cast %80 : vector<1x8x4xf32> to vector<8x4xf32>
    %cst_50 = arith.constant dense<0.000000e+00> : vector<8x256xf32>
    %82 = tpu.matmul %81, %79, %cst_50 {dimension_numbers = #tpu.dot_dimension_numbers<[1], [0], [0], [1], [0, 0, 1, 1], [], []>} : vector<8x4xf32>, vector<4x256xf32>, vector<8x256xf32> -> vector<8x256xf32>
    %83 = arith.addf %77, %82 : vector<8x256xf32>
    %c0_51 = arith.constant 0 : index
    %c0_52 = arith.constant 0 : index
    %c34 = arith.constant 34 : index
    %84 = vector.load %arg1[%c0_51, %c0_52, %c34] : memref<1x4x290xf32, #tpu.memory_space<vmem>>, vector<1x4x256xf32>
    %85 = vector.shape_cast %84 : vector<1x4x256xf32> to vector<4x256xf32>
    %cst_53 = arith.constant 0.000000e+00 : f32
    %86 = vector.broadcast %cst_53 : f32 to vector<4x256xf32>
    %87 = arith.select %26, %85, %86 : vector<4x256xi1>, vector<4x256xf32>
    %c8 = arith.constant 8 : index
    %c0_54 = arith.constant 0 : index
    %c0_55 = arith.constant 0 : index
    %88 = vector.load %arg2[%c8, %c0_54, %c0_55] : memref<9x8x4xf32, #tpu.memory_space<vmem>>, vector<1x8x4xf32>
    %89 = vector.shape_cast %88 : vector<1x8x4xf32> to vector<8x4xf32>
    %cst_56 = arith.constant dense<0.000000e+00> : vector<8x256xf32>
    %90 = tpu.matmul %89, %87, %cst_56 {dimension_numbers = #tpu.dot_dimension_numbers<[1], [0], [0], [1], [0, 0, 1, 1], [], []>} : vector<8x4xf32>, vector<4x256xf32>, vector<8x256xf32> -> vector<8x256xf32>
    %91 = arith.addf %83, %90 : vector<8x256xf32>
    %c0_57 = arith.constant 0 : index
    %c0_58 = arith.constant 0 : index
    %92 = vector.load %arg3[%c0_57, %c0_58] : memref<8x1xf32, #tpu.memory_space<vmem>>, vector<8x1xf32>
    %93 = vector.broadcast %92 : vector<8x1xf32> to vector<8x256xf32>
    %94 = arith.addf %91, %93 : vector<8x256xf32>
    %c0_59 = arith.constant 0 : index
    %c0_60 = arith.constant 0 : index
    %c0_61 = arith.constant 0 : index
    %95 = vector.load %arg4[%c0_59, %c0_60, %c0_61] : memref<1x8x256xf32, #tpu.memory_space<vmem>>, vector<1x8x256xf32>
    %96 = vector.shape_cast %95 : vector<1x8x256xf32> to vector<8x256xf32>
    %97 = vector.shape_cast %94 : vector<8x256xf32> to vector<1x8x256xf32>
    tpu.vector_store %arg4[%c0_59, %c0_60, %c0_61], %97 {strides = array<i32>} : memref<1x8x256xf32, #tpu.memory_space<vmem>>, vector<1x8x256xf32>,
    return
  }
  func.func @transform_0(%arg0: i32) -> (i32, i32, i32) {
    %c0_i32 = arith.constant 0 : i32
    %c0_i32_0 = arith.constant 0 : i32
    %c0_i32_1 = arith.constant 0 : i32
    return %arg0, %c0_i32, %c0_i32_0 : i32, i32, i32
  }
  func.func @transform_1(%arg0: i32) -> (i32, i32, i32) {
    %c0_i32 = arith.constant 0 : i32
    %c0_i32_0 = arith.constant 0 : i32
    %c0_i32_1 = arith.constant 0 : i32
    %c0_i32_2 = arith.constant 0 : i32
    return %c0_i32, %c0_i32_0, %c0_i32_1 : i32, i32, i32
  }
  func.func @transform_2(%arg0: i32) -> (i32, i32) {
    %c0_i32 = arith.constant 0 : i32
    %c0_i32_0 = arith.constant 0 : i32
    %c0_i32_1 = arith.constant 0 : i32
    return %c0_i32, %c0_i32_0 : i32, i32
  }
  func.func @transform_3(%arg0: i32) -> (i32, i32, i32) {
    %c0_i32 = arith.constant 0 : i32
    %c0_i32_0 = arith.constant 0 : i32
    %c0_i32_1 = arith.constant 0 : i32
    return %arg0, %c0_i32, %c0_i32_0 : i32, i32, i32
  }
}

</mosaic_0001>

<llo_original>
// kernel: basic_conv2d.1
$region0: #{basic_conv2d.1}
  #allocation0 [shape = 'u32[]', space=smem, size = 0x4, offset = 0x4, fixed_abs, tag = 'smem constant byte address 0x4 - core index']
  #allocation1 [shape = 'u32[144,128]{1,0:T(1,128)}', space=vmem, size = 0x12000, scoped, tag = 'internal scratch']
  %s0 = inlined_call_operand.vmem [shape: f32[2,4,290], index: 0, kind: input, shape index: {}]
  %s1 = inlined_call_operand.vmem [shape: f32[9,8,4], index: 1, kind: input, shape index: {}]
  %s2 = inlined_call_operand.vmem [shape: f32[8,1], index: 2, kind: input, shape index: {}]
  %s3 = inlined_call_operand.vmem [shape: f32[2,8,256], index: 3, kind: output, shape index: {}]
  %s4 = sld [smem:[#allocation0]]
  $region45: #{basic_conv2d.1} parent=0
    _
  %s6 = ssub.s32 1, %s4
  %s7 = scalar_select 0, %s6, %s4
  loop: start=0, step=1, limit=4
  $region2: #{basic_conv2d.1} parent=0 // loop_pre_header
    _
  $region3: #{basic_conv2d.1} parent=0 // loop_header
    %s9 = sphi 0, %s13
    %p10 = scmp.ge.s32.totalorder %s9, 4
    %s19 = sphi 0, %s21
    %s22 = sphi 0, %s19
    %s23 = sphi 0, %s22
    %s39 = sphi 0, %s23
    %s43 = sphi 0, %s43
    %s45 = sphi 0, %s43
    %s46 = sphi 0, %s45
    %s60 = sphi 0, %s46
    %s64 = sphi 0, %s64
    %s66 = sphi 0, %s64
    %s67 = sphi 0, %s66
    %s81 = sphi 0, %s67
    %s87 = sphi 0, %s89
    %s90 = sphi 0, %s87
    %s91 = sphi 0, %s90
    %s107 = sphi 0, %s91
  $region4: #{basic_conv2d.1} parent=0 // loop_header_branch
    %12 = sbr.rel (%p10) target = $region8
  $region5: #{basic_conv2d.1} parent=0 // loop_body
    %s14 = ssub.s32 %s9, 1
    %s15 = ssub.s32 %s9, 2
    %s16 = sadd.s32 %s9, 1
    %s17 = ssub.s32 %s9, %s16
    %p18 = scmp.eq.s32.totalorder %s17, 0
    %s20 = sadd.s32 %s19, 1
    %s21 = scalar_select %p18, %s19, %s20
    %p24 = pneg %p18
    %p25 = scmp.eq.s32.totalorder %s9, 1
    %p26 = por %p24, %p25
    %p27 = scmp.ne.s32.totalorder %s19, %s22
    %p28 = scmp.eq.s32.totalorder %s9, 0
    %p29 = por %p27, %p28
    %p30 = scmp.ne.s32.totalorder %s19, %s22
    %p31 = scmp.eq.s32.totalorder %s14, 1
    %p32 = por %p30, %p31
    %p33 = scmp.ne.s32.totalorder %s22, %s23
    %p34 = scmp.eq.s32.totalorder %s14, 0
    %p35 = por %p33, %p34
    %p36 = scmp.ne.s32.totalorder %s22, %s23
    %p37 = scmp.eq.s32.totalorder %s15, 1
    %p38 = por %p36, %p37
    %p40 = scmp.ne.s32.totalorder %s23, %s39
    %p41 = scmp.eq.s32.totalorder %s15, 0
    %p42 = por %p40, %p41
    %s44 = sadd.s32 %s43, 1
    %p47 = scmp.eq.s32.totalorder %s9, 1
    %p48 = scmp.ne.s32.totalorder %s43, %s45
    %p49 = scmp.eq.s32.totalorder %s9, 0
    %p50 = por %p48, %p49
    %p51 = scmp.ne.s32.totalorder %s43, %s45
    %p52 = scmp.eq.s32.totalorder %s14, 1
    %p53 = por %p51, %p52
    %p54 = scmp.ne.s32.totalorder %s45, %s46
    %p55 = scmp.eq.s32.totalorder %s14, 0
    %p56 = por %p54, %p55
    %p57 = scmp.ne.s32.totalorder %s45, %s46
    %p58 = scmp.eq.s32.totalorder %s15, 1
    %p59 = por %p57, %p58
    %p61 = scmp.ne.s32.totalorder %s46, %s60
    %p62 = scmp.eq.s32.totalorder %s15, 0
    %p63 = por %p61, %p62
    %s65 = sadd.s32 %s64, 1
    %p68 = scmp.eq.s32.totalorder %s9, 1
    %p69 = scmp.ne.s32.totalorder %s64, %s66
    %p70 = scmp.eq.s32.totalorder %s9, 0
    %p71 = por %p69, %p70
    %p72 = scmp.ne.s32.totalorder %s64, %s66
    %p73 = scmp.eq.s32.totalorder %s14, 1
    %p74 = por %p72, %p73
    %p75 = scmp.ne.s32.totalorder %s66, %s67
    %p76 = scmp.eq.s32.totalorder %s14, 0
    %p77 = por %p75, %p76
    %p78 = scmp.ne.s32.totalorder %s66, %s67
    %p79 = scmp.eq.s32.totalorder %s15, 1
    %p80 = por %p78, %p79
    %p82 = scmp.ne.s32.totalorder %s67, %s81
    %p83 = scmp.eq.s32.totalorder %s15, 0
    %p84 = por %p82, %p83
    %s85 = ssub.s32 %s9, %s16
    %p86 = scmp.eq.s32.totalorder %s85, 0
    %s88 = sadd.s32 %s87, 1
    %s89 = scalar_select %p86, %s87, %s88
    %p92 = pneg %p86
    %p93 = scmp.eq.s32.totalorder %s9, 1
    %p94 = por %p92, %p93
    %p95 = scmp.ne.s32.totalorder %s87, %s90
    %p96 = scmp.eq.s32.totalorder %s9, 0
    %p97 = por %p95, %p96
    %p98 = scmp.ne.s32.totalorder %s87, %s90
    %p99 = scmp.eq.s32.totalorder %s14, 1
    %p100 = por %p98, %p99
    %p101 = scmp.ne.s32.totalorder %s90, %s91
    %p102 = scmp.eq.s32.totalorder %s14, 0
    %p103 = por %p101, %p102
    %p104 = scmp.ne.s32.totalorder %s90, %s91
    %p105 = scmp.eq.s32.totalorder %s15, 1
    %p106 = por %p104, %p105
    %p108 = scmp.ne.s32.totalorder %s91, %s107
    %p109 = scmp.eq.s32.totalorder %s15, 0
    %p110 = por %p108, %p109
    %p111 = scmp.le.s32.totalorder 1, %s9
    %p112 = scmp.lt.s32.totalorder %s9, 3
    %p113 = pnand %p111, %p112
    %p114 = pneg %p113
    // Predicated region
    $region9: #{basic_conv2d.1} parent=5 // pred_check
      _
    $region10: #{basic_conv2d.1} parent=5 // pred_check_branch
      %116 = sbr.rel (%p113) target = $region12
    $region11: #{basic_conv2d.1} parent=5 // pred_region
      %s117 = ssub.s32 %s9, 1
      // Predicated region
      $region13: #{basic_conv2d.1} parent=11 // pred_check
        %p118 = pneg %p56
      $region14: #{basic_conv2d.1} parent=11 // pred_check_branch
        %120 = sbr.rel (%p118) target = $region16
      $region15: #{basic_conv2d.1} parent=11 // pred_region
        _
      $region16: #{basic_conv2d.1} parent=11 // pred_fallthru
        _
      // Predicated region
      $region17: #{basic_conv2d.1} parent=11 // pred_check
        %p121 = pneg %p77
      $region18: #{basic_conv2d.1} parent=11 // pred_check_branch
        %123 = sbr.rel (%p121) target = $region20
      $region19: #{basic_conv2d.1} parent=11 // pred_region
        _
      $region20: #{basic_conv2d.1} parent=11 // pred_fallthru
        _
    $region12: #{basic_conv2d.1} parent=5 // pred_fallthru
      _
    %p124 = scmp.lt.s32.totalorder %s9, 2
    // Predicated region
    $region21: #{basic_conv2d.1} parent=5 // pred_check
      %p125 = pneg %p124
    $region22: #{basic_conv2d.1} parent=5 // pred_check_branch
      %127 = sbr.rel (%p125) target = $region24
    $region23: #{basic_conv2d.1} parent=5 // pred_region
      // Predicated region
      $region25: #{basic_conv2d.1} parent=23 // pred_check
        %p128 = pneg %p29
      $region26: #{basic_conv2d.1} parent=23 // pred_check_branch
        %130 = sbr.rel (%p128) target = $region28
      $region27: #{basic_conv2d.1} parent=23 // pred_region
        %p131 = scmp.lt.s32.totalorder %s9, 1
        %s132 = scalar_select %p131, %s9, 1
        %s133 = smul.addr %s132, 3
        %s134 = smul.addr %s133, 4
        %s135 = scalar_lea.vmem %s0, %s134
      $region28: #{basic_conv2d.1} parent=23 // pred_fallthru
        _
    $region24: #{basic_conv2d.1} parent=5 // pred_fallthru
      _
    %p136 = scmp.le.s32.totalorder 1, %s9
    %p137 = scmp.lt.s32.totalorder %s9, 3
    %p138 = pnand %p136, %p137
    %p139 = pneg %p138
    // Predicated region
    $region29: #{basic_conv2d.1} parent=5 // pred_check
      _
    $region30: #{basic_conv2d.1} parent=5 // pred_check_branch
      %141 = sbr.rel (%p138) target = $region32
    $region31: #{basic_conv2d.1} parent=5 // pred_region
      %s142 = ssub.s32 %s9, 1
      %p143 = scmp.lt.s32.totalorder %s14, 1
      %s144 = scalar_select %p143, %s14, 1
      %s145 = smul.addr %s144, 3
      %s146 = smul.addr %s145, 4
      %s147 = scalar_lea.vmem %s0, %s146
      %p148 = pneg %p35
      %p149 = pneg %p32
      %p150 = pneg %p56
      %p151 = pneg %p53
      %p152 = pneg %p77
      %p153 = pneg %p74
      %p154 = pneg %p103
      %p155 = pneg %p100
      %p156 = scmp.lt.s32.totalorder %s14, 1
      %s157 = scalar_select %p156, %s14, 1
      %s158 = smul.addr %s157, 2
      %s159 = smul.addr %s158, 8
      %s160 = scalar_lea.vmem %s3, %s159
      %p161 = scmp.lt.s32.totalorder %s14, 1
      %s162 = scalar_select %p161, %s14, 1
      %s163 = smul.addr %s162, 3
      %s164 = smul.addr %s163, 4
      %s165 = scalar_lea.vmem %s0, %s164
      %p166 = scmp.lt.s32.totalorder %s14, 1
      %s167 = scalar_select %p166, %s14, 1
      %s168 = smul.addr %s167, 2
      %s169 = smul.addr %s168, 8
      %s170 = scalar_lea.vmem %s3, %s169
      %v171 = vlaneseq
      %v172 = vand.u32 %v171, 127
      %v173 = vadd.s32 %v172, 128
      %vm174 = vcmp.lt.s32.totalorder %v172, 0
      %v175 = vsub.s32 0, %v172
      %v176 = vsel %vm174, %v175, %v172
      %v177 = vshrl.u32 %v176, 4
      %v178 = vand.u32 %v176, 15
      %v179 = vsub.s32 0, %v178
      %v180 = vsel %vm174, %v179, %v178
      %vm181 = vcmp.lt.s32.totalorder %v173, 0
      %v182 = vsub.s32 0, %v173
      %v183 = vsel %vm181, %v182, %v173
      %v184 = vshrl.u32 %v183, 4
      %v185 = vand.u32 %v183, 15
      %v186 = vsub.s32 0, %v185
      %v187 = vsel %vm181, %v186, %v185
      %vm188 = vcmp.ne.s32.totalorder %v180, 0
      %vm189 = vcmp.ne.s32.totalorder %v187, 0
      %vm190 = vcmp.lt.s32.totalorder %v180, 0
      %vm191 = vcmp.lt.s32.totalorder %v187, 0
      %vm192 = vmand %vm190, %vm188
      %vm193 = vmand %vm191, %vm189
      %v194 = vadd.s32 %v180, 16
      %v195 = vadd.s32 %v187, 16
      %v196 = vsel %vm192, %v194, %v180
      %v197 = vsel %vm193, %v195, %v187
      %vm198 = vcmp.ge.s32.totalorder %v196, 1
      %vm199 = vcmp.ge.s32.totalorder %v197, 1
      %vm200 = vcmp.lt.s32.totalorder %v196, 17
      %vm201 = vcmp.lt.s32.totalorder %v197, 17
      %vm202 = vmand %vm198, %vm200
      %vm203 = vmand %vm199, %vm201
      %vm204 = vcmp.ge.s32.totalorder %v196, 4294967295
      %vm205 = vcmp.ge.s32.totalorder %v197, 4294967295
      %vm206 = vcmp.lt.s32.totalorder %v196, 15
      %vm207 = vcmp.lt.s32.totalorder %v197, 15
      %vm208 = vmand %vm204, %vm206
      %vm209 = vmand %vm205, %vm207
      %v210 = vld [vmem:[%s165] sm:$0xff]
      %v212 = vcombine.high %v210, %v210
      %v214 = vsel %vm202, %v210, 0.0
      %v215 = vsel %vm203, %v212, 0.0
      %v216 = vld [vmem:[%s1] sm:$0xff]
      %v217 = vld [vmem:[%s165 + $0x8] sm:$0xf]
      %s218 = scalar_lea.vmem %s1, 8
      %v219 = vld [vmem:[%s218] sm:$0xff]
      %221 = vrot.lane.b32.xlu0 %v210, 127
      %v222 = vpop.permute.xlu0 %221
      %223 = vrot.lane.b32.xlu0 %v212, 127
      %v224 = vpop.permute.xlu0 %223
      %225 = vrot.lane.b32.xlu0 %v217, 127
      %v226 = vpop.permute.xlu0 %225
      %vm227 = vcmask 1039360
      %v228 = vsel %vm227, %v222, %v224
      %v229 = vsel %vm227, %v224, %v226
      %vm230 = vcmask 31744
      %v232 = vsel %vm230, %v219, 0
      %vm234 = vcmask 1043456
      %v235 = vsel %vm234, %v228, 0
      %v237 = vsel %vm234, %v229, 0
      %239 = vmatprep.subr.mxu0 0.0
      %240 = vmatpush1.msra.mxu0 0.0
      %241 = vmatprep.subr.mxu0 0.0
      %242 = vmatpush1.msra.mxu0 0.0
      %243 = vmatprep.subr.mxu0 0.0
      %244 = vmatpush1.msra.mxu0 0.0
      %245 = vmatprep.subr.mxu0 0.0
      %246 = vmatpush1.msra.mxu0 0.0
      %247 = vmatprep.subr.mxu0 0.0
      %248 = vmatpush1.msra.mxu0 0.0
      %249 = vmatprep.subr.mxu0 0.0
      %250 = vmatpush1.msra.mxu0 0.0
      %251 = vmatprep.subr.mxu0 0.0
      %252 = vmatpush1.msra.mxu0 0.0
      %253 = vmatprep.subr.mxu0 0.0
      %254 = vmatpush1.msra.mxu0 0.0
      %255 = vmatprep.subr.mxu0 0.0
      %256 = vmatpush1.msra.mxu0 0.0
      %257 = vmatprep.subr.mxu0 0.0
      %258 = vmatpush1.msra.mxu0 0.0
      %259 = vmatprep.subr.mxu0 0.0
      %260 = vmatpush1.msra.mxu0 0.0
      %261 = vmatprep.subr.mxu0 0.0
      %262 = vmatpush1.msra.mxu0 0.0
      %263 = vmatprep.subr.mxu0 0.0
      %264 = vmatpush1.msra.mxu0 0.0
      %265 = vmatprep.subr.mxu0 0.0
      %266 = vmatpush1.msra.mxu0 0.0
      %267 = vmatprep.subr.mxu0 0.0
      %268 = vmatpush1.msra.mxu0 0.0
      %269 = vmatprep.subr.mxu0 %v237
      %270 = vmatpush1.msra.mxu0 %v235
      %271 = vmatprep.subr.mxu0 0.0
      %272 = vmatpush2.msra.mxu0 0.0
      %273 = vmatprep.subr.mxu0 0.0
      %274 = vmatpush2.msra.mxu0 0.0
      %275 = vmatprep.subr.mxu0 0.0
      %276 = vmatpush2.msra.mxu0 0.0
      %277 = vmatprep.subr.mxu0 0.0
      %278 = vmatpush2.msra.mxu0 0.0
      %279 = vmatprep.subr.mxu0 0.0
      %280 = vmatpush2.msra.mxu0 0.0
      %281 = vmatprep.subr.mxu0 0.0
      %282 = vmatpush2.msra.mxu0 0.0
      %283 = vmatprep.subr.mxu0 0.0
      %284 = vmatpush2.msra.mxu0 0.0
      %285 = vmatprep.subr.mxu0 0.0
      %286 = vmatpush2.msra.mxu0 0.0
      %287 = vmatprep.subr.mxu0 0.0
      %288 = vmatpush2.msra.mxu0 0.0
      %289 = vmatprep.subr.mxu0 0.0
      %290 = vmatpush2.msra.mxu0 0.0
      %291 = vmatprep.subr.mxu0 0.0
      %292 = vmatpush2.msra.mxu0 0.0
      %293 = vmatprep.subr.mxu0 0.0
      %294 = vmatpush2.msra.mxu0 0.0
      %295 = vmatprep.subr.mxu0 0.0
      %296 = vmatpush2.msra.mxu0 0.0
      %297 = vmatprep.subr.mxu0 0.0
      %298 = vmatpush2.msra.mxu0 0.0
      %299 = vmatprep.subr.mxu0 0.0
      %300 = vmatpush2.msra.mxu0 0.0
      %301 = vmatprep.subr.mxu0 0.0
      %302 = vmatpush2.msra.mxu0 0.0
      %303 = vmatprep.mubr.f32.mxu0 0.0
      %304 = vmatmul.mubr.f32.gmra.mxu0 %v232
      %v305 = vpop.f32.mrf.mxu0
      %v306 = vadd.f32 0.0, %v305
      %v307 = vpop.f32.mrf.mxu0
      %v308 = vadd.f32 0.0, %v307
      %309 = vdwg.mxu0
      %v311 = vsel %vm230, %v216, 0
      %v314 = vsel %vm234, %v214, 0
      %v317 = vsel %vm234, %v215, 0
      %319 = vmatprep.subr.mxu0 0.0
      %320 = vmatpush1.msra.mxu0 0.0
      %321 = vmatprep.subr.mxu0 0.0
      %322 = vmatpush1.msra.mxu0 0.0
      %323 = vmatprep.subr.mxu0 0.0
      %324 = vmatpush1.msra.mxu0 0.0
      %325 = vmatprep.subr.mxu0 0.0
      %326 = vmatpush1.msra.mxu0 0.0
      %327 = vmatprep.subr.mxu0 0.0
      %328 = vmatpush1.msra.mxu0 0.0
      %329 = vmatprep.subr.mxu0 0.0
      %330 = vmatpush1.msra.mxu0 0.0
      %331 = vmatprep.subr.mxu0 0.0
      %332 = vmatpush1.msra.mxu0 0.0
      %333 = vmatprep.subr.mxu0 0.0
      %334 = vmatpush1.msra.mxu0 0.0
      %335 = vmatprep.subr.mxu0 0.0
      %336 = vmatpush1.msra.mxu0 0.0
      %337 = vmatprep.subr.mxu0 0.0
      %338 = vmatpush1.msra.mxu0 0.0
      %339 = vmatprep.subr.mxu0 0.0
      %340 = vmatpush1.msra.mxu0 0.0
      %341 = vmatprep.subr.mxu0 0.0
      %342 = vmatpush1.msra.mxu0 0.0
      %343 = vmatprep.subr.mxu0 0.0
      %344 = vmatpush1.msra.mxu0 0.0
      %345 = vmatprep.subr.mxu0 0.0
      %346 = vmatpush1.msra.mxu0 0.0
      %347 = vmatprep.subr.mxu0 0.0
      %348 = vmatpush1.msra.mxu0 0.0
      %349 = vmatprep.subr.mxu0 %v317
      %350 = vmatpush1.msra.mxu0 %v314
      %351 = vmatprep.subr.mxu0 0.0
      %352 = vmatpush2.msra.mxu0 0.0
      %353 = vmatprep.subr.mxu0 0.0
      %354 = vmatpush2.msra.mxu0 0.0
      %355 = vmatprep.subr.mxu0 0.0
      %356 = vmatpush2.msra.mxu0 0.0
      %357 = vmatprep.subr.mxu0 0.0
      %358 = vmatpush2.msra.mxu0 0.0
      %359 = vmatprep.subr.mxu0 0.0
      %360 = vmatpush2.msra.mxu0 0.0
      %361 = vmatprep.subr.mxu0 0.0
      %362 = vmatpush2.msra.mxu0 0.0
      %363 = vmatprep.subr.mxu0 0.0
      %364 = vmatpush2.msra.mxu0 0.0
      %365 = vmatprep.subr.mxu0 0.0
      %366 = vmatpush2.msra.mxu0 0.0
      %367 = vmatprep.subr.mxu0 0.0
      %368 = vmatpush2.msra.mxu0 0.0
      %369 = vmatprep.subr.mxu0 0.0
      %370 = vmatpush2.msra.mxu0 0.0
      %371 = vmatprep.subr.mxu0 0.0
      %372 = vmatpush2.msra.mxu0 0.0
      %373 = vmatprep.subr.mxu0 0.0
      %374 = vmatpush2.msra.mxu0 0.0
      %375 = vmatprep.subr.mxu0 0.0
      %376 = vmatpush2.msra.mxu0 0.0
      %377 = vmatprep.subr.mxu0 0.0
      %378 = vmatpush2.msra.mxu0 0.0
      %379 = vmatprep.subr.mxu0 0.0
      %380 = vmatpush2.msra.mxu0 0.0
      %381 = vmatprep.subr.mxu0 0.0
      %382 = vmatpush2.msra.mxu0 0.0
      %383 = vmatprep.mubr.f32.mxu0 0.0
      %384 = vmatmul.mubr.f32.gmra.mxu0 %v311
      %v385 = vpop.f32.mrf.mxu0
      %v386 = vadd.f32 %v306, %v385
      %v387 = vpop.f32.mrf.mxu0
      %v388 = vadd.f32 %v308, %v387
      %389 = vdwg.mxu0
      %v390 = vld [vmem:[%s165] sm:$0xff]
      %v391 = vld [vmem:[%s165 + $0x8] sm:$0xf]
      %v394 = vcombine.high %v390, %v390
      %395 = vrot.lane.b32.xlu0 %v390, 126
      %v396 = vpop.permute.xlu0 %395
      %397 = vrot.lane.b32.xlu0 %v394, 126
      %v398 = vpop.permute.xlu0 %397
      %399 = vrot.lane.b32.xlu0 %v391, 126
      %v400 = vpop.permute.xlu0 %399
      %vm401 = vcmask 1031168
      %v402 = vsel %vm401, %v396, %v398
      %v403 = vsel %vm401, %v398, %v400
      %v406 = vsel %vm208, %v402, 0.0
      %v407 = vsel %vm209, %v403, 0.0
      %s408 = scalar_lea.vmem %s1, 16
      %v409 = vld [vmem:[%s408] sm:$0xff]
      %v411 = vsel %vm230, %v409, 0
      %v414 = vsel %vm234, %v406, 0
      %v417 = vsel %vm234, %v407, 0
      %419 = vmatprep.subr.mxu0 0.0
      %420 = vmatpush1.msra.mxu0 0.0
      %421 = vmatprep.subr.mxu0 0.0
      %422 = vmatpush1.msra.mxu0 0.0
      %423 = vmatprep.subr.mxu0 0.0
      %424 = vmatpush1.msra.mxu0 0.0
      %425 = vmatprep.subr.mxu0 0.0
      %426 = vmatpush1.msra.mxu0 0.0
      %427 = vmatprep.subr.mxu0 0.0
      %428 = vmatpush1.msra.mxu0 0.0
      %429 = vmatprep.subr.mxu0 0.0
      %430 = vmatpush1.msra.mxu0 0.0
      %431 = vmatprep.subr.mxu0 0.0
      %432 = vmatpush1.msra.mxu0 0.0
      %433 = vmatprep.subr.mxu0 0.0
      %434 = vmatpush1.msra.mxu0 0.0
      %435 = vmatprep.subr.mxu0 0.0
      %436 = vmatpush1.msra.mxu0 0.0
      %437 = vmatprep.subr.mxu0 0.0
      %438 = vmatpush1.msra.mxu0 0.0
      %439 = vmatprep.subr.mxu0 0.0
      %440 = vmatpush1.msra.mxu0 0.0
      %441 = vmatprep.subr.mxu0 0.0
      %442 = vmatpush1.msra.mxu0 0.0
      %443 = vmatprep.subr.mxu0 0.0
      %444 = vmatpush1.msra.mxu0 0.0
      %445 = vmatprep.subr.mxu0 0.0
      %446 = vmatpush1.msra.mxu0 0.0
      %447 = vmatprep.subr.mxu0 0.0
      %448 = vmatpush1.msra.mxu0 0.0
      %449 = vmatprep.subr.mxu0 %v417
      %450 = vmatpush1.msra.mxu0 %v414
      %451 = vmatprep.subr.mxu0 0.0
      %452 = vmatpush2.msra.mxu0 0.0
      %453 = vmatprep.subr.mxu0 0.0
      %454 = vmatpush2.msra.mxu0 0.0
      %455 = vmatprep.subr.mxu0 0.0
      %456 = vmatpush2.msra.mxu0 0.0
      %457 = vmatprep.subr.mxu0 0.0
      %458 = vmatpush2.msra.mxu0 0.0
      %459 = vmatprep.subr.mxu0 0.0
      %460 = vmatpush2.msra.mxu0 0.0
      %461 = vmatprep.subr.mxu0 0.0
      %462 = vmatpush2.msra.mxu0 0.0
      %463 = vmatprep.subr.mxu0 0.0
      %464 = vmatpush2.msra.mxu0 0.0
      %465 = vmatprep.subr.mxu0 0.0
      %466 = vmatpush2.msra.mxu0 0.0
      %467 = vmatprep.subr.mxu0 0.0
      %468 = vmatpush2.msra.mxu0 0.0
      %469 = vmatprep.subr.mxu0 0.0
      %470 = vmatpush2.msra.mxu0 0.0
      %471 = vmatprep.subr.mxu0 0.0
      %472 = vmatpush2.msra.mxu0 0.0
      %473 = vmatprep.subr.mxu0 0.0
      %474 = vmatpush2.msra.mxu0 0.0
      %475 = vmatprep.subr.mxu0 0.0
      %476 = vmatpush2.msra.mxu0 0.0
      %477 = vmatprep.subr.mxu0 0.0
      %478 = vmatpush2.msra.mxu0 0.0
      %479 = vmatprep.subr.mxu0 0.0
      %480 = vmatpush2.msra.mxu0 0.0
      %481 = vmatprep.subr.mxu0 0.0
      %482 = vmatpush2.msra.mxu0 0.0
      %483 = vmatprep.mubr.f32.mxu0 0.0
      %484 = vmatmul.mubr.f32.gmra.mxu0 %v411
      %v485 = vpop.f32.mrf.mxu0
      %v486 = vadd.f32 0.0, %v485
      %v487 = vpop.f32.mrf.mxu0
      %v488 = vadd.f32 0.0, %v487
      %489 = vdwg.mxu0
      %v490 = vadd.f32 %v386, %v486
      %v491 = vadd.f32 %v388, %v488
      %v492 = vld [vmem:[%s165] sm:$0xff]
      %v493 = vld [vmem:[%s165 + $0x8] sm:$0xf]
      %v496 = vcombine.high %v492, %v492
      %497 = vrot.lane.b32.xlu0 %v492, 112
      %v498 = vpop.permute.xlu0 %497
      %499 = vrot.lane.b32.xlu0 %v496, 112
      %v500 = vpop.permute.xlu0 %499
      %501 = vrot.lane.b32.xlu0 %v493, 112
      %v502 = vpop.permute.xlu0 %501
      %vm503 = vcmask 916480
      %v504 = vsel %vm503, %v498, %v500
      %v505 = vsel %vm503, %v500, %v502
      %v508 = vsel %vm202, %v504, 0.0
      %v509 = vsel %vm203, %v505, 0.0
      %s510 = scalar_lea.vmem %s1, 24
      %v511 = vld [vmem:[%s510] sm:$0xff]
      %v513 = vsel %vm230, %v511, 0
      %v516 = vsel %vm234, %v508, 0
      %v519 = vsel %vm234, %v509, 0
      %521 = vmatprep.subr.mxu0 0.0
      %522 = vmatpush1.msra.mxu0 0.0
      %523 = vmatprep.subr.mxu0 0.0
      %524 = vmatpush1.msra.mxu0 0.0
      %525 = vmatprep.subr.mxu0 0.0
      %526 = vmatpush1.msra.mxu0 0.0
      %527 = vmatprep.subr.mxu0 0.0
      %528 = vmatpush1.msra.mxu0 0.0
      %529 = vmatprep.subr.mxu0 0.0
      %530 = vmatpush1.msra.mxu0 0.0
      %531 = vmatprep.subr.mxu0 0.0
      %532 = vmatpush1.msra.mxu0 0.0
      %533 = vmatprep.subr.mxu0 0.0
      %534 = vmatpush1.msra.mxu0 0.0
      %535 = vmatprep.subr.mxu0 0.0
      %536 = vmatpush1.msra.mxu0 0.0
      %537 = vmatprep.subr.mxu0 0.0
      %538 = vmatpush1.msra.mxu0 0.0
      %539 = vmatprep.subr.mxu0 0.0
      %540 = vmatpush1.msra.mxu0 0.0
      %541 = vmatprep.subr.mxu0 0.0
      %542 = vmatpush1.msra.mxu0 0.0
      %543 = vmatprep.subr.mxu0 0.0
      %544 = vmatpush1.msra.mxu0 0.0
      %545 = vmatprep.subr.mxu0 0.0
      %546 = vmatpush1.msra.mxu0 0.0
      %547 = vmatprep.subr.mxu0 0.0
      %548 = vmatpush1.msra.mxu0 0.0
      %549 = vmatprep.subr.mxu0 0.0
      %550 = vmatpush1.msra.mxu0 0.0
      %551 = vmatprep.subr.mxu0 %v519
      %552 = vmatpush1.msra.mxu0 %v516
      %553 = vmatprep.subr.mxu0 0.0
      %554 = vmatpush2.msra.mxu0 0.0
      %555 = vmatprep.subr.mxu0 0.0
      %556 = vmatpush2.msra.mxu0 0.0
      %557 = vmatprep.subr.mxu0 0.0
      %558 = vmatpush2.msra.mxu0 0.0
      %559 = vmatprep.subr.mxu0 0.0
      %560 = vmatpush2.msra.mxu0 0.0
      %561 = vmatprep.subr.mxu0 0.0
      %562 = vmatpush2.msra.mxu0 0.0
      %563 = vmatprep.subr.mxu0 0.0
      %564 = vmatpush2.msra.mxu0 0.0
      %565 = vmatprep.subr.mxu0 0.0
      %566 = vmatpush2.msra.mxu0 0.0
      %567 = vmatprep.subr.mxu0 0.0
      %568 = vmatpush2.msra.mxu0 0.0
      %569 = vmatprep.subr.mxu0 0.0
      %570 = vmatpush2.msra.mxu0 0.0
      %571 = vmatprep.subr.mxu0 0.0
      %572 = vmatpush2.msra.mxu0 0.0
      %573 = vmatprep.subr.mxu0 0.0
      %574 = vmatpush2.msra.mxu0 0.0
      %575 = vmatprep.subr.mxu0 0.0
      %576 = vmatpush2.msra.mxu0 0.0
      %577 = vmatprep.subr.mxu0 0.0
      %578 = vmatpush2.msra.mxu0 0.0
      %579 = vmatprep.subr.mxu0 0.0
      %580 = vmatpush2.msra.mxu0 0.0
      %581 = vmatprep.subr.mxu0 0.0
      %582 = vmatpush2.msra.mxu0 0.0
      %583 = vmatprep.subr.mxu0 0.0
      %584 = vmatpush2.msra.mxu0 0.0
      %585 = vmatprep.mubr.f32.mxu0 0.0
      %586 = vmatmul.mubr.f32.gmra.mxu0 %v513
      %v587 = vpop.f32.mrf.mxu0
      %v588 = vadd.f32 0.0, %v587
      %v589 = vpop.f32.mrf.mxu0
      %v590 = vadd.f32 0.0, %v589
      %591 = vdwg.mxu0
      %v592 = vadd.f32 %v490, %v588
      %v593 = vadd.f32 %v491, %v590
      %v594 = vld [vmem:[%s165] sm:$0xff]
      %v595 = vld [vmem:[%s165 + $0x8] sm:$0xf]
      %s596 = scalar_lea.vmem %s1, 32
      %v597 = vld [vmem:[%s596] sm:$0xff]
      %v600 = vcombine.high %v594, %v594
      %601 = vrot.lane.b32.xlu0 %v594, 111
      %v602 = vpop.permute.xlu0 %601
      %603 = vrot.lane.b32.xlu0 %v600, 111
      %v604 = vpop.permute.xlu0 %603
      %605 = vrot.lane.b32.xlu0 %v595, 111
      %v606 = vpop.permute.xlu0 %605
      %vm607 = vcmask 908288
      %v608 = vsel %vm607, %v602, %v604
      %v609 = vsel %vm607, %v604, %v606
      %v611 = vsel %vm230, %v597, 0
      %v613 = vsel %vm234, %v608, 0
      %v615 = vsel %vm234, %v609, 0
      %617 = vmatprep.subr.mxu0 0.0
      %618 = vmatpush1.msra.mxu0 0.0
      %619 = vmatprep.subr.mxu0 0.0
      %620 = vmatpush1.msra.mxu0 0.0
      %621 = vmatprep.subr.mxu0 0.0
      %622 = vmatpush1.msra.mxu0 0.0
      %623 = vmatprep.subr.mxu0 0.0
      %624 = vmatpush1.msra.mxu0 0.0
      %625 = vmatprep.subr.mxu0 0.0
      %626 = vmatpush1.msra.mxu0 0.0
      %627 = vmatprep.subr.mxu0 0.0
      %628 = vmatpush1.msra.mxu0 0.0
      %629 = vmatprep.subr.mxu0 0.0
      %630 = vmatpush1.msra.mxu0 0.0
      %631 = vmatprep.subr.mxu0 0.0
      %632 = vmatpush1.msra.mxu0 0.0
      %633 = vmatprep.subr.mxu0 0.0
      %634 = vmatpush1.msra.mxu0 0.0
      %635 = vmatprep.subr.mxu0 0.0
      %636 = vmatpush1.msra.mxu0 0.0
      %637 = vmatprep.subr.mxu0 0.0
      %638 = vmatpush1.msra.mxu0 0.0
      %639 = vmatprep.subr.mxu0 0.0
      %640 = vmatpush1.msra.mxu0 0.0
      %641 = vmatprep.subr.mxu0 0.0
      %642 = vmatpush1.msra.mxu0 0.0
      %643 = vmatprep.subr.mxu0 0.0
      %644 = vmatpush1.msra.mxu0 0.0
      %645 = vmatprep.subr.mxu0 0.0
      %646 = vmatpush1.msra.mxu0 0.0
      %647 = vmatprep.subr.mxu0 %v615
      %648 = vmatpush1.msra.mxu0 %v613
      %649 = vmatprep.subr.mxu0 0.0
      %650 = vmatpush2.msra.mxu0 0.0
      %651 = vmatprep.subr.mxu0 0.0
      %652 = vmatpush2.msra.mxu0 0.0
      %653 = vmatprep.subr.mxu0 0.0
      %654 = vmatpush2.msra.mxu0 0.0
      %655 = vmatprep.subr.mxu0 0.0
      %656 = vmatpush2.msra.mxu0 0.0
      %657 = vmatprep.subr.mxu0 0.0
      %658 = vmatpush2.msra.mxu0 0.0
      %659 = vmatprep.subr.mxu0 0.0
      %660 = vmatpush2.msra.mxu0 0.0
      %661 = vmatprep.subr.mxu0 0.0
      %662 = vmatpush2.msra.mxu0 0.0
      %663 = vmatprep.subr.mxu0 0.0
      %664 = vmatpush2.msra.mxu0 0.0
      %665 = vmatprep.subr.mxu0 0.0
      %666 = vmatpush2.msra.mxu0 0.0
      %667 = vmatprep.subr.mxu0 0.0
      %668 = vmatpush2.msra.mxu0 0.0
      %669 = vmatprep.subr.mxu0 0.0
      %670 = vmatpush2.msra.mxu0 0.0
      %671 = vmatprep.subr.mxu0 0.0
      %672 = vmatpush2.msra.mxu0 0.0
      %673 = vmatprep.subr.mxu0 0.0
      %674 = vmatpush2.msra.mxu0 0.0
      %675 = vmatprep.subr.mxu0 0.0
      %676 = vmatpush2.msra.mxu0 0.0
      %677 = vmatprep.subr.mxu0 0.0
      %678 = vmatpush2.msra.mxu0 0.0
      %679 = vmatprep.subr.mxu0 0.0
      %680 = vmatpush2.msra.mxu0 0.0
      %681 = vmatprep.mubr.f32.mxu0 0.0
      %682 = vmatmul.mubr.f32.gmra.mxu0 %v611
      %v683 = vpop.f32.mrf.mxu0
      %v684 = vadd.f32 0.0, %v683
      %v685 = vpop.f32.mrf.mxu0
      %v686 = vadd.f32 0.0, %v685
      %687 = vdwg.mxu0
      %v688 = vadd.f32 %v592, %v684
      %v689 = vadd.f32 %v593, %v686
      %v690 = vld [vmem:[%s165] sm:$0xff]
      %v691 = vld [vmem:[%s165 + $0x8] sm:$0xf]
      %v694 = vcombine.high %v690, %v690
      %695 = vrot.lane.b32.xlu0 %v690, 110
      %v696 = vpop.permute.xlu0 %695
      %697 = vrot.lane.b32.xlu0 %v694, 110
      %v698 = vpop.permute.xlu0 %697
      %699 = vrot.lane.b32.xlu0 %v691, 110
      %v700 = vpop.permute.xlu0 %699
      %vm701 = vcmask 900096
      %v702 = vsel %vm701, %v696, %v698
      %v703 = vsel %vm701, %v698, %v700
      %v706 = vsel %vm208, %v702, 0.0
      %v707 = vsel %vm209, %v703, 0.0
      %s708 = scalar_lea.vmem %s1, 40
      %v709 = vld [vmem:[%s708] sm:$0xff]
      %v711 = vsel %vm230, %v709, 0
      %v714 = vsel %vm234, %v706, 0
      %v717 = vsel %vm234, %v707, 0
      %719 = vmatprep.subr.mxu0 0.0
      %720 = vmatpush1.msra.mxu0 0.0
      %721 = vmatprep.subr.mxu0 0.0
      %722 = vmatpush1.msra.mxu0 0.0
      %723 = vmatprep.subr.mxu0 0.0
      %724 = vmatpush1.msra.mxu0 0.0
      %725 = vmatprep.subr.mxu0 0.0
      %726 = vmatpush1.msra.mxu0 0.0
      %727 = vmatprep.subr.mxu0 0.0
      %728 = vmatpush1.msra.mxu0 0.0
      %729 = vmatprep.subr.mxu0 0.0
      %730 = vmatpush1.msra.mxu0 0.0
      %731 = vmatprep.subr.mxu0 0.0
      %732 = vmatpush1.msra.mxu0 0.0
      %733 = vmatprep.subr.mxu0 0.0
      %734 = vmatpush1.msra.mxu0 0.0
      %735 = vmatprep.subr.mxu0 0.0
      %736 = vmatpush1.msra.mxu0 0.0
      %737 = vmatprep.subr.mxu0 0.0
      %738 = vmatpush1.msra.mxu0 0.0
      %739 = vmatprep.subr.mxu0 0.0
      %740 = vmatpush1.msra.mxu0 0.0
      %741 = vmatprep.subr.mxu0 0.0
      %742 = vmatpush1.msra.mxu0 0.0
      %743 = vmatprep.subr.mxu0 0.0
      %744 = vmatpush1.msra.mxu0 0.0
      %745 = vmatprep.subr.mxu0 0.0
      %746 = vmatpush1.msra.mxu0 0.0
      %747 = vmatprep.subr.mxu0 0.0
      %748 = vmatpush1.msra.mxu0 0.0
      %749 = vmatprep.subr.mxu0 %v717
      %750 = vmatpush1.msra.mxu0 %v714
      %751 = vmatprep.subr.mxu0 0.0
      %752 = vmatpush2.msra.mxu0 0.0
      %753 = vmatprep.subr.mxu0 0.0
      %754 = vmatpush2.msra.mxu0 0.0
      %755 = vmatprep.subr.mxu0 0.0
      %756 = vmatpush2.msra.mxu0 0.0
      %757 = vmatprep.subr.mxu0 0.0
      %758 = vmatpush2.msra.mxu0 0.0
      %759 = vmatprep.subr.mxu0 0.0
      %760 = vmatpush2.msra.mxu0 0.0
      %761 = vmatprep.subr.mxu0 0.0
      %762 = vmatpush2.msra.mxu0 0.0
      %763 = vmatprep.subr.mxu0 0.0
      %764 = vmatpush2.msra.mxu0 0.0
      %765 = vmatprep.subr.mxu0 0.0
      %766 = vmatpush2.msra.mxu0 0.0
      %767 = vmatprep.subr.mxu0 0.0
      %768 = vmatpush2.msra.mxu0 0.0
      %769 = vmatprep.subr.mxu0 0.0
      %770 = vmatpush2.msra.mxu0 0.0
      %771 = vmatprep.subr.mxu0 0.0
      %772 = vmatpush2.msra.mxu0 0.0
      %773 = vmatprep.subr.mxu0 0.0
      %774 = vmatpush2.msra.mxu0 0.0
      %775 = vmatprep.subr.mxu0 0.0
      %776 = vmatpush2.msra.mxu0 0.0
      %777 = vmatprep.subr.mxu0 0.0
      %778 = vmatpush2.msra.mxu0 0.0
      %779 = vmatprep.subr.mxu0 0.0
      %780 = vmatpush2.msra.mxu0 0.0
      %781 = vmatprep.subr.mxu0 0.0
      %782 = vmatpush2.msra.mxu0 0.0
      %783 = vmatprep.mubr.f32.mxu0 0.0
      %784 = vmatmul.mubr.f32.gmra.mxu0 %v711
      %v785 = vpop.f32.mrf.mxu0
      %v786 = vadd.f32 0.0, %v785
      %v787 = vpop.f32.mrf.mxu0
      %v788 = vadd.f32 0.0, %v787
      %789 = vdwg.mxu0
      %v790 = vadd.f32 %v688, %v786
      %v791 = vadd.f32 %v689, %v788
      %v792 = vld [vmem:[%s165] sm:$0xff]
      %v793 = vld [vmem:[%s165 + $0x8] sm:$0xf]
      %v796 = vcombine.high %v792, %v792
      %797 = vrot.lane.b32.xlu0 %v792, 96
      %v798 = vpop.permute.xlu0 %797
      %799 = vrot.lane.b32.xlu0 %v796, 96
      %v800 = vpop.permute.xlu0 %799
      %801 = vrot.lane.b32.xlu0 %v793, 96
      %v802 = vpop.permute.xlu0 %801
      %vm803 = vcmask 785408
      %v804 = vsel %vm803, %v798, %v800
      %v805 = vsel %vm803, %v800, %v802
      %v808 = vsel %vm202, %v804, 0.0
      %v809 = vsel %vm203, %v805, 0.0
      %s810 = scalar_lea.vmem %s1, 48
      %v811 = vld [vmem:[%s810] sm:$0xff]
      %v813 = vsel %vm230, %v811, 0
      %v816 = vsel %vm234, %v808, 0
      %v819 = vsel %vm234, %v809, 0
      %821 = vmatprep.subr.mxu0 0.0
      %822 = vmatpush1.msra.mxu0 0.0
      %823 = vmatprep.subr.mxu0 0.0
      %824 = vmatpush1.msra.mxu0 0.0
      %825 = vmatprep.subr.mxu0 0.0
      %826 = vmatpush1.msra.mxu0 0.0
      %827 = vmatprep.subr.mxu0 0.0
      %828 = vmatpush1.msra.mxu0 0.0
      %829 = vmatprep.subr.mxu0 0.0
      %830 = vmatpush1.msra.mxu0 0.0
      %831 = vmatprep.subr.mxu0 0.0
      %832 = vmatpush1.msra.mxu0 0.0
      %833 = vmatprep.subr.mxu0 0.0
      %834 = vmatpush1.msra.mxu0 0.0
      %835 = vmatprep.subr.mxu0 0.0
      %836 = vmatpush1.msra.mxu0 0.0
      %837 = vmatprep.subr.mxu0 0.0
      %838 = vmatpush1.msra.mxu0 0.0
      %839 = vmatprep.subr.mxu0 0.0
      %840 = vmatpush1.msra.mxu0 0.0
      %841 = vmatprep.subr.mxu0 0.0
      %842 = vmatpush1.msra.mxu0 0.0
      %843 = vmatprep.subr.mxu0 0.0
      %844 = vmatpush1.msra.mxu0 0.0
      %845 = vmatprep.subr.mxu0 0.0
      %846 = vmatpush1.msra.mxu0 0.0
      %847 = vmatprep.subr.mxu0 0.0
      %848 = vmatpush1.msra.mxu0 0.0
      %849 = vmatprep.subr.mxu0 0.0
      %850 = vmatpush1.msra.mxu0 0.0
      %851 = vmatprep.subr.mxu0 %v819
      %852 = vmatpush1.msra.mxu0 %v816
      %853 = vmatprep.subr.mxu0 0.0
      %854 = vmatpush2.msra.mxu0 0.0
      %855 = vmatprep.subr.mxu0 0.0
      %856 = vmatpush2.msra.mxu0 0.0
      %857 = vmatprep.subr.mxu0 0.0
      %858 = vmatpush2.msra.mxu0 0.0
      %859 = vmatprep.subr.mxu0 0.0
      %860 = vmatpush2.msra.mxu0 0.0
      %861 = vmatprep.subr.mxu0 0.0
      %862 = vmatpush2.msra.mxu0 0.0
      %863 = vmatprep.subr.mxu0 0.0
      %864 = vmatpush2.msra.mxu0 0.0
      %865 = vmatprep.subr.mxu0 0.0
      %866 = vmatpush2.msra.mxu0 0.0
      %867 = vmatprep.subr.mxu0 0.0
      %868 = vmatpush2.msra.mxu0 0.0
      %869 = vmatprep.subr.mxu0 0.0
      %870 = vmatpush2.msra.mxu0 0.0
      %871 = vmatprep.subr.mxu0 0.0
      %872 = vmatpush2.msra.mxu0 0.0
      %873 = vmatprep.subr.mxu0 0.0
      %874 = vmatpush2.msra.mxu0 0.0
      %875 = vmatprep.subr.mxu0 0.0
      %876 = vmatpush2.msra.mxu0 0.0
      %877 = vmatprep.subr.mxu0 0.0
      %878 = vmatpush2.msra.mxu0 0.0
      %879 = vmatprep.subr.mxu0 0.0
      %880 = vmatpush2.msra.mxu0 0.0
      %881 = vmatprep.subr.mxu0 0.0
      %882 = vmatpush2.msra.mxu0 0.0
      %883 = vmatprep.subr.mxu0 0.0
      %884 = vmatpush2.msra.mxu0 0.0
      %885 = vmatprep.mubr.f32.mxu0 0.0
      %886 = vmatmul.mubr.f32.gmra.mxu0 %v813
      %v887 = vpop.f32.mrf.mxu0
      %v888 = vadd.f32 0.0, %v887
      %v889 = vpop.f32.mrf.mxu0
      %v890 = vadd.f32 0.0, %v889
      %891 = vdwg.mxu0
      %v892 = vadd.f32 %v790, %v888
      %v893 = vadd.f32 %v791, %v890
      %v894 = vld [vmem:[%s165] sm:$0xff]
      %v895 = vld [vmem:[%s165 + $0x8] sm:$0xf]
      %s896 = scalar_lea.vmem %s1, 56
      %v897 = vld [vmem:[%s896] sm:$0xff]
      %v900 = vcombine.high %v894, %v894
      %901 = vrot.lane.b32.xlu0 %v894, 95
      %v902 = vpop.permute.xlu0 %901
      %903 = vrot.lane.b32.xlu0 %v900, 95
      %v904 = vpop.permute.xlu0 %903
      %905 = vrot.lane.b32.xlu0 %v895, 95
      %v906 = vpop.permute.xlu0 %905
      %vm907 = vcmask 777216
      %v908 = vsel %vm907, %v902, %v904
      %v909 = vsel %vm907, %v904, %v906
      %v911 = vsel %vm230, %v897, 0
      %v913 = vsel %vm234, %v908, 0
      %v915 = vsel %vm234, %v909, 0
      %917 = vmatprep.subr.mxu0 0.0
      %918 = vmatpush1.msra.mxu0 0.0
      %919 = vmatprep.subr.mxu0 0.0
      %920 = vmatpush1.msra.mxu0 0.0
      %921 = vmatprep.subr.mxu0 0.0
      %922 = vmatpush1.msra.mxu0 0.0
      %923 = vmatprep.subr.mxu0 0.0
      %924 = vmatpush1.msra.mxu0 0.0
      %925 = vmatprep.subr.mxu0 0.0
      %926 = vmatpush1.msra.mxu0 0.0
      %927 = vmatprep.subr.mxu0 0.0
      %928 = vmatpush1.msra.mxu0 0.0
      %929 = vmatprep.subr.mxu0 0.0
      %930 = vmatpush1.msra.mxu0 0.0
      %931 = vmatprep.subr.mxu0 0.0
      %932 = vmatpush1.msra.mxu0 0.0
      %933 = vmatprep.subr.mxu0 0.0
      %934 = vmatpush1.msra.mxu0 0.0
      %935 = vmatprep.subr.mxu0 0.0
      %936 = vmatpush1.msra.mxu0 0.0
      %937 = vmatprep.subr.mxu0 0.0
      %938 = vmatpush1.msra.mxu0 0.0
      %939 = vmatprep.subr.mxu0 0.0
      %940 = vmatpush1.msra.mxu0 0.0
      %941 = vmatprep.subr.mxu0 0.0
      %942 = vmatpush1.msra.mxu0 0.0
      %943 = vmatprep.subr.mxu0 0.0
      %944 = vmatpush1.msra.mxu0 0.0
      %945 = vmatprep.subr.mxu0 0.0
      %946 = vmatpush1.msra.mxu0 0.0
      %947 = vmatprep.subr.mxu0 %v915
      %948 = vmatpush1.msra.mxu0 %v913
      %949 = vmatprep.subr.mxu0 0.0
      %950 = vmatpush2.msra.mxu0 0.0
      %951 = vmatprep.subr.mxu0 0.0
      %952 = vmatpush2.msra.mxu0 0.0
      %953 = vmatprep.subr.mxu0 0.0
      %954 = vmatpush2.msra.mxu0 0.0
      %955 = vmatprep.subr.mxu0 0.0
      %956 = vmatpush2.msra.mxu0 0.0
      %957 = vmatprep.subr.mxu0 0.0
      %958 = vmatpush2.msra.mxu0 0.0
      %959 = vmatprep.subr.mxu0 0.0
      %960 = vmatpush2.msra.mxu0 0.0
      %961 = vmatprep.subr.mxu0 0.0
      %962 = vmatpush2.msra.mxu0 0.0
      %963 = vmatprep.subr.mxu0 0.0
      %964 = vmatpush2.msra.mxu0 0.0
      %965 = vmatprep.subr.mxu0 0.0
      %966 = vmatpush2.msra.mxu0 0.0
      %967 = vmatprep.subr.mxu0 0.0
      %968 = vmatpush2.msra.mxu0 0.0
      %969 = vmatprep.subr.mxu0 0.0
      %970 = vmatpush2.msra.mxu0 0.0
      %971 = vmatprep.subr.mxu0 0.0
      %972 = vmatpush2.msra.mxu0 0.0
      %973 = vmatprep.subr.mxu0 0.0
      %974 = vmatpush2.msra.mxu0 0.0
      %975 = vmatprep.subr.mxu0 0.0
      %976 = vmatpush2.msra.mxu0 0.0
      %977 = vmatprep.subr.mxu0 0.0
      %978 = vmatpush2.msra.mxu0 0.0
      %979 = vmatprep.subr.mxu0 0.0
      %980 = vmatpush2.msra.mxu0 0.0
      %981 = vmatprep.mubr.f32.mxu0 0.0
      %982 = vmatmul.mubr.f32.gmra.mxu0 %v911
      %v983 = vpop.f32.mrf.mxu0
      %v984 = vadd.f32 0.0, %v983
      %v985 = vpop.f32.mrf.mxu0
      %v986 = vadd.f32 0.0, %v985
      %987 = vdwg.mxu0
      %v988 = vadd.f32 %v892, %v984
      %v989 = vadd.f32 %v893, %v986
      %v990 = vld [vmem:[%s165] sm:$0xff]
      %v991 = vld [vmem:[%s165 + $0x8] sm:$0xf]
      %v994 = vcombine.high %v990, %v990
      %995 = vrot.lane.b32.xlu0 %v990, 94
      %v996 = vpop.permute.xlu0 %995
      %997 = vrot.lane.b32.xlu0 %v994, 94
      %v998 = vpop.permute.xlu0 %997
      %999 = vrot.lane.b32.xlu0 %v991, 94
      %v1000 = vpop.permute.xlu0 %999
      %vm1001 = vcmask 769024
      %v1002 = vsel %vm1001, %v996, %v998
      %v1003 = vsel %vm1001, %v998, %v1000
      %v1006 = vsel %vm208, %v1002, 0.0
      %v1007 = vsel %vm209, %v1003, 0.0
      %s1008 = scalar_lea.vmem %s1, 64
      %v1009 = vld [vmem:[%s1008] sm:$0xff]
      %v1011 = vsel %vm230, %v1009, 0
      %v1014 = vsel %vm234, %v1006, 0
      %v1017 = vsel %vm234, %v1007, 0
      %1019 = vmatprep.subr.mxu0 0.0
      %1020 = vmatpush1.msra.mxu0 0.0
      %1021 = vmatprep.subr.mxu0 0.0
      %1022 = vmatpush1.msra.mxu0 0.0
      %1023 = vmatprep.subr.mxu0 0.0
      %1024 = vmatpush1.msra.mxu0 0.0
      %1025 = vmatprep.subr.mxu0 0.0
      %1026 = vmatpush1.msra.mxu0 0.0
      %1027 = vmatprep.subr.mxu0 0.0
      %1028 = vmatpush1.msra.mxu0 0.0
      %1029 = vmatprep.subr.mxu0 0.0
      %1030 = vmatpush1.msra.mxu0 0.0
      %1031 = vmatprep.subr.mxu0 0.0
      %1032 = vmatpush1.msra.mxu0 0.0
      %1033 = vmatprep.subr.mxu0 0.0
      %1034 = vmatpush1.msra.mxu0 0.0
      %1035 = vmatprep.subr.mxu0 0.0
      %1036 = vmatpush1.msra.mxu0 0.0
      %1037 = vmatprep.subr.mxu0 0.0
      %1038 = vmatpush1.msra.mxu0 0.0
      %1039 = vmatprep.subr.mxu0 0.0
      %1040 = vmatpush1.msra.mxu0 0.0
      %1041 = vmatprep.subr.mxu0 0.0
      %1042 = vmatpush1.msra.mxu0 0.0
      %1043 = vmatprep.subr.mxu0 0.0
      %1044 = vmatpush1.msra.mxu0 0.0
      %1045 = vmatprep.subr.mxu0 0.0
      %1046 = vmatpush1.msra.mxu0 0.0
      %1047 = vmatprep.subr.mxu0 0.0
      %1048 = vmatpush1.msra.mxu0 0.0
      %1049 = vmatprep.subr.mxu0 %v1017
      %1050 = vmatpush1.msra.mxu0 %v1014
      %1051 = vmatprep.subr.mxu0 0.0
      %1052 = vmatpush2.msra.mxu0 0.0
      %1053 = vmatprep.subr.mxu0 0.0
      %1054 = vmatpush2.msra.mxu0 0.0
      %1055 = vmatprep.subr.mxu0 0.0
      %1056 = vmatpush2.msra.mxu0 0.0
      %1057 = vmatprep.subr.mxu0 0.0
      %1058 = vmatpush2.msra.mxu0 0.0
      %1059 = vmatprep.subr.mxu0 0.0
      %1060 = vmatpush2.msra.mxu0 0.0
      %1061 = vmatprep.subr.mxu0 0.0
      %1062 = vmatpush2.msra.mxu0 0.0
      %1063 = vmatprep.subr.mxu0 0.0
      %1064 = vmatpush2.msra.mxu0 0.0
      %1065 = vmatprep.subr.mxu0 0.0
      %1066 = vmatpush2.msra.mxu0 0.0
      %1067 = vmatprep.subr.mxu0 0.0
      %1068 = vmatpush2.msra.mxu0 0.0
      %1069 = vmatprep.subr.mxu0 0.0
      %1070 = vmatpush2.msra.mxu0 0.0
      %1071 = vmatprep.subr.mxu0 0.0
      %1072 = vmatpush2.msra.mxu0 0.0
      %1073 = vmatprep.subr.mxu0 0.0
      %1074 = vmatpush2.msra.mxu0 0.0
      %1075 = vmatprep.subr.mxu0 0.0
      %1076 = vmatpush2.msra.mxu0 0.0
      %1077 = vmatprep.subr.mxu0 0.0
      %1078 = vmatpush2.msra.mxu0 0.0
      %1079 = vmatprep.subr.mxu0 0.0
      %1080 = vmatpush2.msra.mxu0 0.0
      %1081 = vmatprep.subr.mxu0 0.0
      %1082 = vmatpush2.msra.mxu0 0.0
      %1083 = vmatprep.mubr.f32.mxu0 0.0
      %1084 = vmatmul.mubr.f32.gmra.mxu0 %v1011
      %v1085 = vpop.f32.mrf.mxu0
      %v1086 = vadd.f32 0.0, %v1085
      %v1087 = vpop.f32.mrf.mxu0
      %v1088 = vadd.f32 0.0, %v1087
      %1089 = vdwg.mxu0
      %v1090 = vadd.f32 %v988, %v1086
      %v1091 = vadd.f32 %v989, %v1088
      %v1092 = vld [vmem:[%s2] sm:$0xff]
      %1094 = vset.pattern.permute.xlu0 0
      %1095 = vperm.xlu0 %1094, %v1092
      %v1096 = vpop.permute.xlu0 %1095
      %v1098 = vadd.f32 %v1090, %v1096
      %v1099 = vadd.f32 %v1091, %v1096
      %1100 = vst [vmem:[%s170] sm:$0xff] %v1098
      %1101 = vst [vmem:[%s170 + $0x8] sm:$0xff] %v1099
      %p1102 = scmp.lt.s32.totalorder %s14, 1
      %s1103 = scalar_select %p1102, %s14, 1
      %s1104 = smul.addr %s1103, 2
      %s1105 = smul.addr %s1104, 8
      %s1106 = scalar_lea.vmem %s3, %s1105
      // Predicated region
      $region33: #{basic_conv2d.1} parent=31 // pred_check
        %p1107 = pneg %p100
      $region34: #{basic_conv2d.1} parent=31 // pred_check_branch
        %1109 = sbr.rel (%p1107) target = $region36
      $region35: #{basic_conv2d.1} parent=31 // pred_region
        _
      $region36: #{basic_conv2d.1} parent=31 // pred_fallthru
        _
    $region32: #{basic_conv2d.1} parent=5 // pred_fallthru
      _
    %p1110 = scmp.le.s32.totalorder 2, %s9
    // Predicated region
    $region37: #{basic_conv2d.1} parent=5 // pred_check
      %p1111 = pneg %p1110
    $region38: #{basic_conv2d.1} parent=5 // pred_check_branch
      %1113 = sbr.rel (%p1111) target = $region40
    $region39: #{basic_conv2d.1} parent=5 // pred_region
      %s1114 = ssub.s32 %s9, 2
      // Predicated region
      $region41: #{basic_conv2d.1} parent=39 // pred_check
        %p1115 = pneg %p106
      $region42: #{basic_conv2d.1} parent=39 // pred_check_branch
        %1117 = sbr.rel (%p1115) target = $region44
      $region43: #{basic_conv2d.1} parent=39 // pred_region
        %p1118 = scmp.lt.s32.totalorder %s15, 1
        %s1119 = scalar_select %p1118, %s15, 1
        %s1120 = smul.addr %s1119, 2
        %s1121 = smul.addr %s1120, 8
        %s1122 = scalar_lea.vmem %s3, %s1121
      $region44: #{basic_conv2d.1} parent=39 // pred_fallthru
        _
    $region40: #{basic_conv2d.1} parent=5 // pred_fallthru
      _
  $region6: #{basic_conv2d.1} parent=0 // loop_footer
    %s13 = sadd.s32 1, %s9
  $region7: #{basic_conv2d.1} parent=0 // loop_footer_branch
    %8 = sbr.rel target = $region3
  $region8: #{basic_conv2d.1} parent=0 // loop_exit
    _

</llo_original>
